<compile_context>
chip_gen: v7x
topology: tpu7x:2x2x1
jax: 0.10.0
libtpu: 0.0.40
codegen_flags: <defaults>
</compile_context>

<pallas_src>
import jax
import jax.numpy as jnp
from jax import lax
from jax.experimental import pallas as pl
from jax.experimental.pallas import tpu as pltpu


def _round_up(x, m):
    return (x + m - 1) // m * m


def _generator_kernel(x_ref, w_ref, b_ref, o_ref, m_ref, l_ref):
    # x_ref: (tm, H) bf16   row tile (resident across the vocab axis)
    # w_ref: (tv, H) bf16   vocab tile of the (V, H) weight (no transpose)
    # b_ref: (1, tv) f32    vocab tile of the bias
    # o_ref: (tm, Vp) f32   full output row-block, resident across the vocab axis
    # m_ref, l_ref: (tm, 1) f32 running max / running sum-exp
    v = pl.program_id(1)
    nv = pl.num_programs(1)
    tv = w_ref.shape[0]

    @pl.when(v == 0)
    def _():
        m_ref[...] = jnp.full_like(m_ref, -jnp.inf)
        l_ref[...] = jnp.zeros_like(l_ref)

    # (tm, H) x (tv, H) contracted on H -> (tm, tv); bf16 in, f32 accumulate (MXU).
    score = lax.dot_general(
        x_ref[...], w_ref[...],
        dimension_numbers=(((1,), (1,)), ((), ())),
        preferred_element_type=jnp.float32,
    )
    score = score + b_ref[...]                      # bias add in f32

    # Online log-sum-exp update (all f32, per row).
    m_prev = m_ref[...]
    m_new = jnp.maximum(m_prev, jnp.max(score, axis=-1, keepdims=True))
    l_ref[...] = l_ref[...] * jnp.exp(m_prev - m_new) + jnp.sum(
        jnp.exp(score - m_new), axis=-1, keepdims=True)
    m_ref[...] = m_new

    # Stage raw scores into the resident output row-block (lane-dense write).
    col = pl.multiple_of(v * tv, 128)
    o_ref[:, pl.ds(col, tv)] = score.astype(o_ref.dtype)

    # Last vocab tile: normalize the whole row-block in VMEM.
    @pl.when(v == nv - 1)
    def _():
        lse = m_ref[...] + jnp.log(l_ref[...])
        o_ref[...] = (o_ref[...].astype(jnp.float32) - lse).astype(o_ref.dtype)


def generator_forward(dec_out, weight, bias, *, tm=256, tv=2048,
                      out_dtype=jnp.float32,
                      vmem_budget_bytes=48 * 1024 * 1024):
    """dec_out: (B, S, H); weight: (V, H); bias: (V,) -> (B, S, V) log-probs."""
    B, S, H = dec_out.shape
    V = weight.shape[0]
    N = B * S

    # ---- tile selection (sublane / lane aligned, budgeted for 64 MiB VMEM) ----
    tm = max(8, min(tm, _round_up(N, 8)) // 8 * 8)
    v_pad = _round_up(V, 128)
    tv = max(128, min(tv, v_pad) // 128 * 128)
    v_pad = _round_up(V, tv)

    def _vmem_bytes(tm_, tv_, vp_):
        return (2 * tm_ * H * 2          # x tile, bf16, double-buffered
                + 2 * tv_ * H * 2        # weight tile, bf16, double-buffered
                + 2 * tv_ * 4            # bias tile
                + 2 * tm_ * vp_ * 4      # resident output row-block, double-buffered
                + 2 * tm_ * 4 * 2)       # m / l scratch

    while tm > 8 and _vmem_bytes(tm, tv, v_pad) > vmem_budget_bytes:
        tm = max(8, (tm // 2) // 8 * 8)
    while tv > 128 and _vmem_bytes(tm, tv, v_pad) > vmem_budget_bytes:
        tv = max(128, (tv // 2) // 128 * 128)
        v_pad = _round_up(V, tv)
    n_pad = _round_up(N, tm)

    # ---- input prep: flatten rows, bf16 MXU operands, pad rows / vocab --------
    x = dec_out.reshape(N, H).astype(jnp.bfloat16)
    w = weight.astype(jnp.bfloat16)
    b = bias.astype(jnp.float32)
    if n_pad != N:
        x = jnp.pad(x, ((0, n_pad - N), (0, 0)))
    if v_pad != V:
        w = jnp.pad(w, ((0, v_pad - V), (0, 0)))
        b = jnp.pad(b, (0, v_pad - V), constant_values=-1e30)  # masked out of softmax
    b = b.reshape(1, v_pad)

    grid = (n_pad // tm, v_pad // tv)

    cost = pl.CostEstimate(
        flops=2 * n_pad * H * v_pad,
        transcendentals=n_pad * v_pad,
        bytes_accessed=(n_pad * H * 2                 # x (bf16)
                        + grid[0] * v_pad * H * 2     # weight re-streamed per row tile
                        + v_pad * 4                   # bias
                        + n_pad * v_pad * 4),         # output
    )

    out = pl.pallas_call(
        _generator_kernel,
        out_shape=jax.ShapeDtypeStruct((n_pad, v_pad), out_dtype),
        grid_spec=pltpu.PrefetchScalarGridSpec(
            num_scalar_prefetch=0,
            grid=grid,
            in_specs=[
                pl.BlockSpec((tm, H), lambda i, v: (i, 0)),   # x rows, resident over v
                pl.BlockSpec((tv, H), lambda i, v: (v, 0)),   # (V, H) weight tile
                pl.BlockSpec((1, tv), lambda i, v: (0, v)),   # bias tile
            ],
            out_specs=pl.BlockSpec((tm, v_pad), lambda i, v: (i, 0)),  # resident row block
            scratch_shapes=[
                pltpu.VMEM((tm, 1), jnp.float32),   # running max
                pltpu.VMEM((tm, 1), jnp.float32),   # running sum-exp
            ],
        ),
        compiler_params=pltpu.CompilerParams(
            dimension_semantics=("parallel", "arbitrary"),
            vmem_limit_bytes=64 * 1024 * 1024,
        ),
        cost_estimate=cost,
    )(x, w, b)

    return out[:N, :V].reshape(B, S, V)


def _reference(dec_out, weight, bias):
    # Same bf16 rounding of the matmul operands as the kernel, f32 accumulate.
    x = dec_out.astype(jnp.bfloat16).astype(jnp.float32)
    w = weight.astype(jnp.bfloat16).astype(jnp.float32)
    score = jnp.einsum("bsh,vh->bsv", x, w) + bias
    return jax.nn.log_softmax(score, axis=-1)


if __name__ == "__main__":
    key = jax.random.PRNGKey(0)
    k_x, k_w, k_b = jax.random.split(key, 3)

    batch, seq, hidden, vocab = 2, 8, 32, 128

    # Deterministic parameter init mirroring the module's __init__:
    #   weight: xavier_uniform_ over (vocab, hidden); bias: U(-1/sqrt(hidden), 1/sqrt(hidden))
    limit_w = (6.0 / (hidden + vocab)) ** 0.5
    weight = jax.random.uniform(k_w, (vocab, hidden), jnp.float32, -limit_w, limit_w)
    limit_b = 1.0 / (hidden ** 0.5)
    bias = jax.random.uniform(k_b, (vocab,), jnp.float32, -limit_b, limit_b)

    dec_out = jax.random.normal(k_x, (batch, seq, hidden), jnp.float32)

    lsm_score = generator_forward(dec_out, weight, bias)
    lsm_score = jax.block_until_ready(lsm_score)

    ref = _reference(dec_out, weight, bias)
    assert lsm_score.shape == (batch, seq, vocab)
    assert jnp.allclose(lsm_score, ref, atol=1e-4, rtol=1e-4), float(
        jnp.max(jnp.abs(lsm_score - ref)))

    print("KERNEL_OK")
</pallas_src>

<mosaic_0001>
module attributes {stable_mosaic.version = 11 : i64} {
  func.func @_generator_kernel(%arg0: i32, %arg1: i32, %arg2: memref<16x32xbf16, #tpu.memory_space<vmem>>, %arg3: memref<128x32xbf16, #tpu.memory_space<vmem>>, %arg4: memref<1x128xf32, #tpu.memory_space<vmem>>, %arg5: memref<16x128xf32, #tpu.memory_space<vmem>>, %arg6: memref<16x1xf32, #tpu.memory_space<vmem>>, %arg7: memref<16x1xf32, #tpu.memory_space<vmem>>) attributes {dimension_semantics = [#tpu.dimension_semantics<parallel>, #tpu.dimension_semantics<arbitrary>], iteration_bounds = array<i64: 1, 1>, scalar_prefetch = 0 : i64, scratch_operands = 2 : i64, tpu.core_type = #tpu.core_type<tc>, window_params = [{transform_indices = @transform_0, window_bounds = array<i64: 16, 32>}, {transform_indices = @transform_1, window_bounds = array<i64: 128, 32>}, {transform_indices = @transform_2, window_bounds = array<i64: 1, 128>}, {transform_indices = @transform_3, window_bounds = array<i64: 16, 128>}]} {
    %c0_i32 = arith.constant 0 : i32
    %0 = arith.cmpi eq, %arg1, %c0_i32 : i32
    %1 = arith.extui %0 : i1 to i32
    %c0_i32_0 = arith.constant 0 : i32
    %2 = arith.cmpi ne, %1, %c0_i32_0 : i32
    scf.if %2 {
      %cst_19 = arith.constant 0xFF800000 : f32
      %32 = vector.broadcast %cst_19 : f32 to vector<16x1xf32>
      %c0_20 = arith.constant 0 : index
      %c0_21 = arith.constant 0 : index
      %33 = vector.load %arg6[%c0_20, %c0_21] : memref<16x1xf32, #tpu.memory_space<vmem>>, vector<16x1xf32>
      tpu.vector_store %arg6[%c0_20, %c0_21], %32 {strides = array<i32>} : memref<16x1xf32, #tpu.memory_space<vmem>>, vector<16x1xf32>,
      %cst_22 = arith.constant 0.000000e+00 : f32
      %34 = vector.broadcast %cst_22 : f32 to vector<16x1xf32>
      %c0_23 = arith.constant 0 : index
      %c0_24 = arith.constant 0 : index
      %35 = vector.load %arg7[%c0_23, %c0_24] : memref<16x1xf32, #tpu.memory_space<vmem>>, vector<16x1xf32>
      tpu.vector_store %arg7[%c0_23, %c0_24], %34 {strides = array<i32>} : memref<16x1xf32, #tpu.memory_space<vmem>>, vector<16x1xf32>,
    } else {
    }
    %c0 = arith.constant 0 : index
    %c0_1 = arith.constant 0 : index
    %3 = vector.load %arg2[%c0, %c0_1] : memref<16x32xbf16, #tpu.memory_space<vmem>>, vector<16x32xbf16>
    %c0_2 = arith.constant 0 : index
    %c0_3 = arith.constant 0 : index
    %4 = vector.load %arg3[%c0_2, %c0_3] : memref<128x32xbf16, #tpu.memory_space<vmem>>, vector<128x32xbf16>
    %cst = arith.constant dense<0.000000e+00> : vector<16x128xf32>
    %5 = tpu.matmul %3, %4, %cst {dimension_numbers = #tpu.dot_dimension_numbers<[1], [1], [0], [0], [0, 0, 1, 0], [], []>} : vector<16x32xbf16>, vector<128x32xbf16>, vector<16x128xf32> -> vector<16x128xf32>
    %c0_4 = arith.constant 0 : index
    %c0_5 = arith.constant 0 : index
    %6 = vector.load %arg4[%c0_4, %c0_5] : memref<1x128xf32, #tpu.memory_space<vmem>>, vector<1x128xf32>
    %7 = vector.broadcast %6 : vector<1x128xf32> to vector<16x128xf32>
    %8 = arith.addf %5, %7 : vector<16x128xf32>
    %c0_6 = arith.constant 0 : index
    %c0_7 = arith.constant 0 : index
    %9 = vector.load %arg6[%c0_6, %c0_7] : memref<16x1xf32, #tpu.memory_space<vmem>>, vector<16x1xf32>
    %cst_8 = arith.constant dense<0xFF800000> : vector<16xf32>
    %10 = vector.multi_reduction <maximumf>, %8, %cst_8 [1] : vector<16x128xf32> to vector<16xf32>
    %11 = vector.shape_cast %10 : vector<16xf32> to vector<16x1xf32>
    %12 = arith.maximumf %9, %11 : vector<16x1xf32>
    %c0_9 = arith.constant 0 : index
    %c0_10 = arith.constant 0 : index
    %13 = vector.load %arg7[%c0_9, %c0_10] : memref<16x1xf32, #tpu.memory_space<vmem>>, vector<16x1xf32>
    %14 = arith.subf %9, %12 : vector<16x1xf32>
    %15 = math.exp %14 : vector<16x1xf32>
    %16 = arith.mulf %13, %15 : vector<16x1xf32>
    %17 = vector.broadcast %12 : vector<16x1xf32> to vector<16x128xf32>
    %18 = arith.subf %8, %17 : vector<16x128xf32>
    %19 = math.exp %18 : vector<16x128xf32>
    %cst_11 = arith.constant dense<0.000000e+00> : vector<16xf32>
    %20 = vector.multi_reduction <add>, %19, %cst_11 [1] : vector<16x128xf32> to vector<16xf32>
    %21 = vector.shape_cast %20 : vector<16xf32> to vector<16x1xf32>
    %22 = arith.addf %16, %21 : vector<16x1xf32>
    %c0_12 = arith.constant 0 : index
    %c0_13 = arith.constant 0 : index
    %23 = vector.load %arg7[%c0_12, %c0_13] : memref<16x1xf32, #tpu.memory_space<vmem>>, vector<16x1xf32>
    tpu.vector_store %arg7[%c0_12, %c0_13], %22 {strides = array<i32>} : memref<16x1xf32, #tpu.memory_space<vmem>>, vector<16x1xf32>,
    %c0_14 = arith.constant 0 : index
    %c0_15 = arith.constant 0 : index
    %24 = vector.load %arg6[%c0_14, %c0_15] : memref<16x1xf32, #tpu.memory_space<vmem>>, vector<16x1xf32>
    tpu.vector_store %arg6[%c0_14, %c0_15], %12 {strides = array<i32>} : memref<16x1xf32, #tpu.memory_space<vmem>>, vector<16x1xf32>,
    %c128_i32 = arith.constant 128 : i32
    %25 = arith.muli %arg1, %c128_i32 : i32
    %26 = tpu.assume_multiple %25, 128 : i32
    %c0_16 = arith.constant 0 : index
    %27 = arith.index_cast %26 : i32 to index
    %28 = vector.load %arg5[%c0_16, %27] : memref<16x128xf32, #tpu.memory_space<vmem>>, vector<16x128xf32>
    tpu.vector_store %arg5[%c0_16, %27], %8 {strides = array<i32>} : memref<16x128xf32, #tpu.memory_space<vmem>>, vector<16x128xf32>,
    %c0_i32_17 = arith.constant 0 : i32
    %29 = arith.cmpi eq, %arg1, %c0_i32_17 : i32
    %30 = arith.extui %29 : i1 to i32
    %c0_i32_18 = arith.constant 0 : i32
    %31 = arith.cmpi ne, %30, %c0_i32_18 : i32
    scf.if %31 {
      %c0_19 = arith.constant 0 : index
      %c0_20 = arith.constant 0 : index
      %32 = vector.load %arg6[%c0_19, %c0_20] : memref<16x1xf32, #tpu.memory_space<vmem>>, vector<16x1xf32>
      %c0_21 = arith.constant 0 : index
      %c0_22 = arith.constant 0 : index
      %33 = vector.load %arg7[%c0_21, %c0_22] : memref<16x1xf32, #tpu.memory_space<vmem>>, vector<16x1xf32>
      %34 = math.log %33 : vector<16x1xf32>
      %35 = arith.addf %32, %34 : vector<16x1xf32>
      %c0_23 = arith.constant 0 : index
      %c0_24 = arith.constant 0 : index
      %36 = vector.load %arg5[%c0_23, %c0_24] : memref<16x128xf32, #tpu.memory_space<vmem>>, vector<16x128xf32>
      %37 = vector.broadcast %35 : vector<16x1xf32> to vector<16x128xf32>
      %38 = arith.subf %36, %37 : vector<16x128xf32>
      %c0_25 = arith.constant 0 : index
      %c0_26 = arith.constant 0 : index
      %39 = vector.load %arg5[%c0_25, %c0_26] : memref<16x128xf32, #tpu.memory_space<vmem>>, vector<16x128xf32>
      tpu.vector_store %arg5[%c0_25, %c0_26], %38 {strides = array<i32>} : memref<16x128xf32, #tpu.memory_space<vmem>>, vector<16x128xf32>,
    } else {
    }
    return
  }
  func.func @transform_0(%arg0: i32, %arg1: i32) -> (i32, i32) {
    %c0_i32 = arith.constant 0 : i32
    %c0_i32_0 = arith.constant 0 : i32
    return %arg0, %c0_i32 : i32, i32
  }
  func.func @transform_1(%arg0: i32, %arg1: i32) -> (i32, i32) {
    %c0_i32 = arith.constant 0 : i32
    %c0_i32_0 = arith.constant 0 : i32
    return %arg1, %c0_i32 : i32, i32
  }
  func.func @transform_2(%arg0: i32, %arg1: i32) -> (i32, i32) {
    %c0_i32 = arith.constant 0 : i32
    %c0_i32_0 = arith.constant 0 : i32
    return %c0_i32, %arg1 : i32, i32
  }
  func.func @transform_3(%arg0: i32, %arg1: i32) -> (i32, i32) {
    %c0_i32 = arith.constant 0 : i32
    %c0_i32_0 = arith.constant 0 : i32
    return %arg0, %c0_i32 : i32, i32
  }
}

</mosaic_0001>

<llo_original>
// kernel: tpu_custom_call.1
$region0: #{tpu_custom_call.1}
  #allocation0 [shape = 'u32[]', space=smem, size = 0x4, offset = 0x4, fixed_abs, tag = 'smem constant byte address 0x4 - core index']
  #allocation1 [shape = 'u32[144,128]{1,0:T(1,128)}', space=vmem, size = 0x12000, scoped, tag = 'internal scratch']
  #allocation2 [shape = 'f32[16,1]{1,0:T(8,128)}', space=vmem, size = 0x2000, scoped, tag = 'scratch operand']
  #allocation3 [shape = 'f32[16,1]{1,0:T(8,128)}', space=vmem, size = 0x2000, scoped, tag = 'scratch operand']
  %s0 = inlined_call_operand.hbm [shape: bf16[16,32], index: 0, kind: input, shape index: {}]
  %s1 = inlined_call_operand.hbm [shape: bf16[128,32], index: 1, kind: input, shape index: {}]
  %s2 = inlined_call_operand.hbm [shape: f32[1,128], index: 2, kind: input, shape index: {}]
  %s3 = inlined_call_operand.hbm [shape: f32[16,128], index: 3, kind: output, shape index: {}]
  %s4 = sld [smem:[#allocation0]]
  $region42: #{tpu_custom_call.1} parent=0
    _
  %s6 = ssub.s32 1, %s4
  %s7 = scalar_select 0, %s6, %s4
  $region1: #{tpu_custom_call.1} parent=0
    #allocation4 [shape = 'u8[4096]{0}', space=vmem, size = 0x1000, scoped, tag = 'input window, operand 0, single buffered']
    #allocation5 [shape = 's32[1]{0}', space=sflag, size = 0x4, scoped, tag = 'scoped memory for tpu_custom_call.1']
    #allocation6 [shape = 's32[1]{0}', space=sflag, size = 0x4, scoped, tag = 'scoped memory for tpu_custom_call.1']
    #allocation7 [shape = 'u8[32768]{0}', space=vmem, size = 0x8000, scoped, tag = 'input window, operand 1, single buffered']
    #allocation8 [shape = 's32[1]{0}', space=sflag, size = 0x4, scoped, tag = 'scoped memory for tpu_custom_call.1']
    #allocation9 [shape = 'u8[512]{0}', space=vmem, size = 0x400, scoped, tag = 'input window, operand 2, single buffered']
    #allocation10 [shape = 'u8[8192]{0}', space=vmem, size = 0x2000, scoped, tag = 'output window, operand 0, single buffered']
    %8 = vsyncpa [#allocation5], 0
    %9 = vsyncpa [#allocation8], 0
    %10 = vsyncpa [#allocation6], 0
    // Predicated region
    $region2: #{tpu_custom_call.1} parent=1 // pred_check
      _
    $region3: #{tpu_custom_call.1} parent=1 // pred_check_branch
      %12 = sbr.rel (0) target = $region5
    $region4: #{tpu_custom_call.1} parent=1 // pred_region
      %s14 = ssub.s32 128, 128
      %15 = vsyncadd [#allocation5], %s14
      %s16 = sshll.u32 [#allocation4], 4
      %s17 = int_to_ptr.vmem [resolvable:$true] %s16
      %22 = dma.hbm_to_vmem [thread:$0]  %s0, 128, %s17, [#allocation5], 64, 64, 4
    $region5: #{tpu_custom_call.1} parent=1 // pred_fallthru
      _
    // Predicated region
    $region6: #{tpu_custom_call.1} parent=1 // pred_check
      _
    $region7: #{tpu_custom_call.1} parent=1 // pred_check_branch
      %24 = sbr.rel (0) target = $region9
    $region8: #{tpu_custom_call.1} parent=1 // pred_region
      %s26 = ssub.s32 1024, 1024
      %27 = vsyncadd [#allocation8], %s26
      %s28 = sshll.u32 [#allocation7], 4
      %s29 = int_to_ptr.vmem [resolvable:$true] %s28
      %34 = dma.hbm_to_vmem [thread:$0]  %s1, 1024, %s29, [#allocation8], 64, 64, 4
    $region9: #{tpu_custom_call.1} parent=1 // pred_fallthru
      _
    // Predicated region
    $region10: #{tpu_custom_call.1} parent=1 // pred_check
      _
    $region11: #{tpu_custom_call.1} parent=1 // pred_check_branch
      %36 = sbr.rel (0) target = $region13
    $region12: #{tpu_custom_call.1} parent=1 // pred_region
      %s38 = ssub.s32 16, 16
      %39 = vsyncadd [#allocation8], %s38
      %s41 = sshll.u32 [#allocation9], 4
      %s42 = int_to_ptr.vmem [resolvable:$true] %s41
      %44 = dma.hbm_to_vmem [thread:$0]  %s2, 16, %s42, [#allocation8]
    $region13: #{tpu_custom_call.1} parent=1 // pred_fallthru
      _
    // Predicated region
    $region14: #{tpu_custom_call.1} parent=1 // pred_check
      _
    $region15: #{tpu_custom_call.1} parent=1 // pred_check_branch
      %46 = sbr.rel (0) target = $region17
    $region16: #{tpu_custom_call.1} parent=1 // pred_region
      %47 = dma.done [#allocation5], 128
    $region17: #{tpu_custom_call.1} parent=1 // pred_fallthru
      _
    // Predicated region
    $region18: #{tpu_custom_call.1} parent=1 // pred_check
      _
    $region19: #{tpu_custom_call.1} parent=1 // pred_check_branch
      %49 = sbr.rel (0) target = $region21
    $region20: #{tpu_custom_call.1} parent=1 // pred_region
      %50 = dma.done [#allocation8], 1024
    $region21: #{tpu_custom_call.1} parent=1 // pred_fallthru
      _
    // Predicated region
    $region22: #{tpu_custom_call.1} parent=1 // pred_check
      _
    $region23: #{tpu_custom_call.1} parent=1 // pred_check_branch
      %52 = sbr.rel (0) target = $region25
    $region24: #{tpu_custom_call.1} parent=1 // pred_region
      %53 = dma.done [#allocation8], 16
    $region25: #{tpu_custom_call.1} parent=1 // pred_fallthru
      _
    %p55 = scmp.eq.s32.totalorder 0, 0
    // Predicated region
    $region26: #{tpu_custom_call.1} parent=1 // pred_check
      %p56 = pneg %p55
    $region27: #{tpu_custom_call.1} parent=1 // pred_check_branch
      %58 = sbr.rel (%p56) target = $region29
    $region28: #{tpu_custom_call.1} parent=1 // pred_region
      %vm59 = vcmask 7168
      %60 = vst.msk [vmem:[#allocation2] sm:$0xff] %vm59, -inf
      %61 = vst.msk [vmem:[#allocation2 + $0x8] sm:$0xff] %vm59, -inf
      %62 = vst.msk [vmem:[#allocation3] sm:$0xff] %vm59, 0.0
      %63 = vst.msk [vmem:[#allocation3 + $0x8] sm:$0xff] %vm59, 0.0
    $region29: #{tpu_custom_call.1} parent=1 // pred_fallthru
      _
    %v64 = vld [vmem:[#allocation4] sm:$0xf]
    %v65 = vld [vmem:[#allocation4 + $0x4] sm:$0xf]
    %v66 = vld [vmem:[#allocation7] sm:$0xf]
    %v67 = vld [vmem:[#allocation7 + $0x4] sm:$0xf]
    %v68 = vld [vmem:[#allocation7 + $0x8] sm:$0xf]
    %v69 = vld [vmem:[#allocation7 + $0xc] sm:$0xf]
    %v70 = vld [vmem:[#allocation7 + $0x10] sm:$0xf]
    %v71 = vld [vmem:[#allocation7 + $0x14] sm:$0xf]
    %v72 = vld [vmem:[#allocation7 + $0x18] sm:$0xf]
    %v73 = vld [vmem:[#allocation7 + $0x1c] sm:$0xf]
    %v74 = vld [vmem:[#allocation7 + $0x20] sm:$0xf]
    %v75 = vld [vmem:[#allocation7 + $0x24] sm:$0xf]
    %v76 = vld [vmem:[#allocation7 + $0x28] sm:$0xf]
    %v77 = vld [vmem:[#allocation7 + $0x2c] sm:$0xf]
    %v78 = vld [vmem:[#allocation7 + $0x30] sm:$0xf]
    %v79 = vld [vmem:[#allocation7 + $0x34] sm:$0xf]
    %v80 = vld [vmem:[#allocation7 + $0x38] sm:$0xf]
    %v81 = vld [vmem:[#allocation7 + $0x3c] sm:$0xf]
    %v82 = vld [vmem:[#allocation9] sm:$0x1]
    %v84 = vlaneseq
    %v85 = vshrl.u32 %v84, 7
    %v86 = vsub.s32 0, %v85
    %v87 = vrot.slane %v82, %v86
    %v91 = vunpack.c.l.b16 %v64
    %v92 = vunpack.c.l.b16 %v65
    %v93 = vpack.c.b16 %v92, %v91
    %v110 = vunpack.c.l.b16 %v66
    %v111 = vunpack.c.l.b16 %v67
    %v112 = vunpack.c.l.b16 %v68
    %v113 = vunpack.c.l.b16 %v69
    %v114 = vunpack.c.l.b16 %v70
    %v115 = vunpack.c.l.b16 %v71
    %v116 = vunpack.c.l.b16 %v72
    %v117 = vunpack.c.l.b16 %v73
    %v118 = vunpack.c.l.b16 %v74
    %v119 = vunpack.c.l.b16 %v75
    %v120 = vunpack.c.l.b16 %v76
    %v121 = vunpack.c.l.b16 %v77
    %v122 = vunpack.c.l.b16 %v78
    %v123 = vunpack.c.l.b16 %v79
    %v124 = vunpack.c.l.b16 %v80
    %v125 = vunpack.c.l.b16 %v81
    %v126 = vpack.c.b16 %v111, %v110
    %v127 = vpack.c.b16 %v113, %v112
    %v128 = vpack.c.b16 %v115, %v114
    %v129 = vpack.c.b16 %v117, %v116
    %v130 = vpack.c.b16 %v119, %v118
    %v131 = vpack.c.b16 %v121, %v120
    %v132 = vpack.c.b16 %v123, %v122
    %v133 = vpack.c.b16 %v125, %v124
    %vm134 = vcmask 261120
    %v136 = vsel %vm134, %v93, 0
    %v139 = vsel %vm134, %v126, 0
    %v142 = vsel %vm134, %v127, 0
    %v145 = vsel %vm134, %v128, 0
    %v148 = vsel %vm134, %v129, 0
    %v151 = vsel %vm134, %v130, 0
    %v154 = vsel %vm134, %v131, 0
    %v157 = vsel %vm134, %v132, 0
    %v160 = vsel %vm134, %v133, 0
    %162 = vmatprep.subr.bf16.mxu0 0
    %163 = vmatpush1.bf16.xpose.msra.mxu0 %v139
    %164 = vmatprep.subr.bf16.mxu0 0
    %165 = vmatpush1.bf16.xpose.msra.mxu0 %v142
    %166 = vmatprep.subr.bf16.mxu0 0
    %167 = vmatpush1.bf16.xpose.msra.mxu0 %v145
    %168 = vmatprep.subr.bf16.mxu0 0
    %169 = vmatpush1.bf16.xpose.msra.mxu0 %v148
    %170 = vmatprep.subr.bf16.mxu0 0
    %171 = vmatpush1.bf16.xpose.msra.mxu0 %v151
    %172 = vmatprep.subr.bf16.mxu0 0
    %173 = vmatpush1.bf16.xpose.msra.mxu0 %v154
    %174 = vmatprep.subr.bf16.mxu0 0
    %175 = vmatpush1.bf16.xpose.msra.mxu0 %v157
    %176 = vmatprep.subr.bf16.mxu0 0
    %177 = vmatpush1.bf16.xpose.msra.mxu0 %v160
    %178 = vmatprep.subr.bf16.mxu0 0
    %179 = vmatpush1.bf16.xpose.msra.mxu0 0
    %180 = vmatprep.subr.bf16.mxu0 0
    %181 = vmatpush1.bf16.xpose.msra.mxu0 0
    %182 = vmatprep.subr.bf16.mxu0 0
    %183 = vmatpush1.bf16.xpose.msra.mxu0 0
    %184 = vmatprep.subr.bf16.mxu0 0
    %185 = vmatpush1.bf16.xpose.msra.mxu0 0
    %186 = vmatprep.subr.bf16.mxu0 0
    %187 = vmatpush1.bf16.xpose.msra.mxu0 0
    %188 = vmatprep.subr.bf16.mxu0 0
    %189 = vmatpush1.bf16.xpose.msra.mxu0 0
    %190 = vmatprep.subr.bf16.mxu0 0
    %191 = vmatpush1.bf16.xpose.msra.mxu0 0
    %192 = vmatprep.subr.bf16.mxu0 0
    %193 = vmatpush1.bf16.xpose.msra.mxu0 0
    %194 = vmatprep.mubr.bf16.mxu0 0
    %195 = vmatmul.mubr.bf16.gmra.mrb[0].mxu0 %v136
    %v196 = vpop.f32.mrb[0].mxu0
    %v197 = vadd.f32 %v87, %v196
    %v198 = vpop.f32.mrb[0].mxu0
    %v199 = vpop.f32.mrb[0].mxu0
    %v200 = vadd.f32 %v87, %v199
    %v201 = vpop.f32.mrb[0].mxu0
    %202 = vdwg.mxu0
    %v203 = vld [vmem:[#allocation2] sm:$0xff]
    %v204 = vld [vmem:[#allocation2 + $0x8] sm:$0xff]
    %205 = vmax.xlane.f32.xlu0 %v197
    %v206 = vpop.xlane.xlu0 %205
    %207 = vmax.xlane.f32.xlu0 %v200
    %v208 = vpop.xlane.xlu0 %207
    %v209 = vmax.f32 %v203, %v206
    %v210 = vmax.f32 %v204, %v208
    %v211 = vld [vmem:[#allocation3] sm:$0xff]
    %v212 = vld [vmem:[#allocation3 + $0x8] sm:$0xff]
    %v213 = vsub.f32 %v203, %v209
    %v214 = vsub.f32 %v204, %v210
    %v215 = vmul.f32 %v213, 1.442695
    %v216 = vpow.pop %v215
    %v217 = vmul.f32 %v214, 1.442695
    %v218 = vpow.pop %v217
    %v219 = vmul.f32 %v211, %v216
    %v220 = vmul.f32 %v212, %v218
    %222 = vset.pattern.permute.xlu0 0
    %223 = vperm.xlu0 %222, %v209
    %v224 = vpop.permute.xlu0 %223
    %227 = vset.pattern.permute.xlu0 0
    %228 = vperm.xlu0 %227, %v210
    %v229 = vpop.permute.xlu0 %228
    %v231 = vsub.f32 %v197, %v224
    %v232 = vsub.f32 %v200, %v229
    %v233 = vmul.f32 %v231, 1.442695
    %v234 = vpow.pop %v233
    %v235 = vmul.f32 %v232, 1.442695
    %v236 = vpow.pop %v235
    %237 = vadd.xlane.f32.xlu0 %v234
    %v238 = vpop.xlane.xlu0 %237
    %239 = vadd.xlane.f32.xlu0 %v236
    %v240 = vpop.xlane.xlu0 %239
    %v241 = vadd.f32 %v219, %v238
    %v242 = vadd.f32 %v220, %v240
    %vm243 = vcmask 7168
    %244 = vst.msk [vmem:[#allocation3] sm:$0xff] %vm243, %v241
    %245 = vst.msk [vmem:[#allocation3 + $0x8] sm:$0xff] %vm243, %v242
    %246 = vst.msk [vmem:[#allocation2] sm:$0xff] %vm243, %v209
    %247 = vst.msk [vmem:[#allocation2 + $0x8] sm:$0xff] %vm243, %v210
    %s248 = smul.u32 0, 128
    %s249 = sshra.s32 %s248, 7
    %s250 = sand.u32 %s248, 127
    %s251 = scalar_lea.vmem [#allocation10], %s249
    %252 = vst [vmem:[%s251] sm:$0xff] %v197
    %253 = vst [vmem:[%s251 + $0x8] sm:$0xff] %v200
    // Predicated region
    $region30: #{tpu_custom_call.1} parent=1 // pred_check
      %p254 = pneg %p55
    $region31: #{tpu_custom_call.1} parent=1 // pred_check_branch
      %256 = sbr.rel (%p254) target = $region33
    $region32: #{tpu_custom_call.1} parent=1 // pred_region
      %v257 = vld [vmem:[#allocation2] sm:$0xff]
      %v258 = vld [vmem:[#allocation2 + $0x8] sm:$0xff]
      %v259 = vld [vmem:[#allocation3] sm:$0xff]
      %v260 = vld [vmem:[#allocation3 + $0x8] sm:$0xff]
      %v261 = vlog2.pop %v259
      %v262 = vmul.f32 %v261, 0.6931472
      %v263 = vlog2.pop %v260
      %v264 = vmul.f32 %v263, 0.6931472
      %v265 = vadd.f32 %v257, %v262
      %v266 = vadd.f32 %v258, %v264
      %v267 = vld [vmem:[#allocation10] sm:$0xff]
      %v268 = vld [vmem:[#allocation10 + $0x8] sm:$0xff]
      %270 = vset.pattern.permute.xlu0 0
      %271 = vperm.xlu0 %270, %v265
      %v272 = vpop.permute.xlu0 %271
      %275 = vset.pattern.permute.xlu0 0
      %276 = vperm.xlu0 %275, %v266
      %v277 = vpop.permute.xlu0 %276
      %v279 = vsub.f32 %v267, %v272
      %v280 = vsub.f32 %v268, %v277
      %281 = vst [vmem:[#allocation10] sm:$0xff] %v279
      %282 = vst [vmem:[#allocation10 + $0x8] sm:$0xff] %v280
    $region33: #{tpu_custom_call.1} parent=1 // pred_fallthru
      _
    // Predicated region
    $region34: #{tpu_custom_call.1} parent=1 // pred_check
      _
    $region35: #{tpu_custom_call.1} parent=1 // pred_check_branch
      %284 = sbr.rel (0) target = $region37
    $region36: #{tpu_custom_call.1} parent=1 // pred_region
      %s286 = ssub.s32 256, 256
      %287 = vsyncadd [#allocation6], %s286
      %s288 = sshll.u32 [#allocation10], 4
      %s289 = int_to_ptr.vmem [resolvable:$true] %s288
      %294 = dma.vmem_to_hbm [thread:$0]  %s289, 256, %s3, [#allocation6], 128, 128, 8
    $region37: #{tpu_custom_call.1} parent=1 // pred_fallthru
      _
    // Predicated region
    $region38: #{tpu_custom_call.1} parent=1 // pred_check
      _
    $region39: #{tpu_custom_call.1} parent=1 // pred_check_branch
      %296 = sbr.rel (0) target = $region41
    $region40: #{tpu_custom_call.1} parent=1 // pred_region
      %297 = dma.done [#allocation6], 256
    $region41: #{tpu_custom_call.1} parent=1 // pred_fallthru
      _
    %298 = vsyncpa [#allocation5], 1
    %299 = vsyncpa [#allocation8], 1
    %300 = vsyncpa [#allocation6], 1

</llo_original>
